<compile_context>
chip_gen: v5e
topology: v5e:2x2
jax: 0.10.0
libtpu: 0.0.40
codegen_flags: <defaults>
</compile_context>

<pallas_src>
import functools

import jax
import jax.numpy as jnp
from jax import lax
from jax.experimental import pallas as pl
from jax.experimental.pallas import tpu as pltpu


def _round_up(x, m):
    return ((x + m - 1) // m) * m


def cnn_kernel(idx_ref, table_ref, wfc_ref, out_ref):
    # idx_ref:   [2, bt, 1] int32  word-1 / word-2 vocab ids for this batch tile.
    # table_ref: [V_pad, F_pad] bf16 VMEM-resident conv-output table
    #            (row v = emb[v] @ Wconv^T + conv_b ; column F is constant 1.0 and
    #             carries the fc bias through the max).
    # wfc_ref:   [1, F_pad] f32 fc weight row; fc bias stored at column F.
    # out_ref:   [1, bt] f32 lane-dense sigmoid outputs for this batch tile.
    _, bt, _ = idx_ref.shape
    v_pad, f_pad = table_ref.shape
    vb = min(512, v_pad)

    w1 = idx_ref[0]           # [bt, 1] int32
    w2 = idx_ref[1]           # [bt, 1] int32

    h1 = jnp.zeros((bt, f_pad), jnp.float32)
    h2 = jnp.zeros((bt, f_pad), jnp.float32)

    # In-kernel gather of the two h_table rows per example via a one-hot MXU matmul
    # against the VMEM-resident table, chunked over the vocab (static trip count).
    # TODO(synk): for very large vocabularies replace this O(V)-per-example one-hot
    # gather with a vector gather / manual DMA gather from an HBM-resident table.
    for off in range(0, v_pad, vb):
        step = min(vb, v_pad - off)
        tab = table_ref[off:off + step, :]                             # [step, F_pad] bf16
        iota = lax.broadcasted_iota(jnp.int32, (bt, step), 1) + off    # [bt, step]
        oh1 = (iota == w1).astype(tab.dtype)                           # one-hot, bf16
        oh2 = (iota == w2).astype(tab.dtype)
        h1 = h1 + jnp.dot(oh1, tab, preferred_element_type=jnp.float32)
        h2 = h2 + jnp.dot(oh2, tab, preferred_element_type=jnp.float32)

    # torch.max over the 2 sequence positions, then fc (VPU mul + XLU lane reduce)
    # and sigmoid -- all kept in f32 (v5e has no bf16 VPU/EUP datapath).
    hm = jnp.maximum(h1, h2)                                           # [bt, F_pad]
    logits = jnp.sum(hm * wfc_ref[...], axis=-1)                       # [bt]
    out_ref[...] = jax.nn.sigmoid(logits)[None, :].astype(out_ref.dtype)


def prepare_params(emb_table, conv_w, conv_b, fc_w, fc_b):
    """One-time: apply the pointwise conv to the whole vocab, pad, fold biases, cast bf16."""
    V, E = emb_table.shape
    F = conv_w.shape[0]
    V_pad = _round_up(V, 128)
    F_pad = _round_up(F + 1, 128)   # +1: constant channel that carries the fc bias

    # h_table[v] = emb[v] @ Wconv^T + conv_b   (pointwise conv over every vocab entry)
    h = emb_table.astype(jnp.float32) @ jnp.transpose(conv_w[:, :, 0]).astype(jnp.float32)
    h = h + conv_b.astype(jnp.float32)[None, :]

    h_table = jnp.zeros((V_pad, F_pad), jnp.float32)
    h_table = h_table.at[:V, :F].set(h)
    # fc-bias carrier: column F is 1.0 for every row, max(1,1)==1, multiplied by wfc[0,F]=fc_b.
    # This column (and the zero padding) must stay frozen if the table is ever re-built.
    h_table = h_table.at[:, F].set(1.0)
    h_table = h_table.astype(jnp.bfloat16)          # HBM/VMEM-resident data in bf16

    wfc = jnp.zeros((1, F_pad), jnp.float32)         # epilogue weights stay f32
    wfc = wfc.at[0, :F].set(fc_w[0].astype(jnp.float32))
    wfc = wfc.at[0, F].set(fc_b[0].astype(jnp.float32))
    return h_table, wfc


@functools.partial(jax.jit, static_argnames=("block_b",))
def cnn_model_forward(word_pair, h_table, wfc, block_b=2048):
    """word_pair: int [B, 2]; returns sigmoid output [B] (matches torch .squeeze())."""
    B = word_pair.shape[0]
    V_pad, F_pad = h_table.shape

    # Batch tile: multiple of 128 (lane-dense output), capped at ~B/4 so the grid keeps
    # >= 4 "parallel" steps for v7x's two TensorCores / pipelining on large B.
    bt = max(128, min(block_b, _round_up(-(-B // 4), 128)))
    B_pad = _round_up(B, bt)
    grid = (B_pad // bt,)

    # Only the int32 word ids go through HBM per example (8 B/example); padded batch
    # rows gather vocab row 0 and are sliced off at the end.
    idx = jnp.stack([word_pair[:, 0], word_pair[:, 1]], axis=0).astype(jnp.int32)   # [2, B]
    idx = jnp.pad(idx, ((0, 0), (0, B_pad - B)))[:, :, None]                         # [2, B_pad, 1]

    # Explicit scoped-VMEM budget: resident table (double-buffered) + lane-padded index
    # tiles + one-hot / accumulator work buffers + headroom; <= 56 MiB (v7x physical 64).
    vb = min(512, V_pad)
    table_bytes = 2 * V_pad * F_pad * 2
    idx_bytes = 2 * (2 * bt * 128 * 4)
    work_bytes = 2 * bt * vb * 2 + 2 * bt * F_pad * 4
    vmem_limit = int(min(56 << 20,
                         max(32 << 20, table_bytes + idx_bytes + work_bytes + (8 << 20))))

    out = pl.pallas_call(
        cnn_kernel,
        out_shape=jax.ShapeDtypeStruct((1, B_pad), jnp.float32),
        grid_spec=pltpu.PrefetchScalarGridSpec(
            num_scalar_prefetch=0,
            grid=grid,
            in_specs=[
                pl.BlockSpec((2, bt, 1), lambda i: (0, i, 0)),     # word-id tile
                pl.BlockSpec((V_pad, F_pad), lambda i: (0, 0)),    # resident conv table
                pl.BlockSpec((1, F_pad), lambda i: (0, 0)),        # resident fc row
            ],
            out_specs=pl.BlockSpec((1, bt), lambda i: (0, i)),
        ),
        compiler_params=pltpu.CompilerParams(
            dimension_semantics=("parallel",),
            vmem_limit_bytes=vmem_limit),
    )(idx, h_table, wfc)

    return out[0, :B]   # matches torch .squeeze() for B > 1 (B == 1 would be 0-d in torch)


def init_params(key, vocab_size, embedding_dim=100, num_filters=64):
    k1, k2, k3, k4, k5 = jax.random.split(key, 5)
    # Deterministic synthetic init (shapes match nn.Embedding / nn.Conv1d / nn.Linear).
    emb_table = jax.random.normal(k1, (vocab_size, embedding_dim), jnp.float32)
    conv_w = jax.random.normal(k2, (num_filters, embedding_dim, 1), jnp.float32) * 0.1
    conv_b = jax.random.normal(k3, (num_filters,), jnp.float32) * 0.1
    fc_w = jax.random.normal(k4, (1, num_filters), jnp.float32) * 0.1
    fc_b = jax.random.normal(k5, (1,), jnp.float32) * 0.1
    return emb_table, conv_w, conv_b, fc_w, fc_b


if __name__ == "__main__":
    key = jax.random.PRNGKey(0)
    kp, kx = jax.random.split(key)

    vocab_size = 32
    embedding_dim = 100
    num_filters = 64
    batch = 8

    emb_table, conv_w, conv_b, fc_w, fc_b = init_params(
        kp, vocab_size, embedding_dim, num_filters)
    h_table, wfc = prepare_params(emb_table, conv_w, conv_b, fc_w, fc_b)

    word_pair = jax.random.randint(kx, (batch, 2), 0, vocab_size, dtype=jnp.int32)

    out = cnn_model_forward(word_pair, h_table, wfc)
    out = jax.block_until_ready(out)

    # Pure-JAX f32 reference (kernel stores h_table in bf16 -> loose tolerance).
    e1 = emb_table[word_pair[:, 0]]
    e2 = emb_table[word_pair[:, 1]]
    h1 = e1 @ conv_w[:, :, 0].T + conv_b
    h2 = e2 @ conv_w[:, :, 0].T + conv_b
    ref = jax.nn.sigmoid(jnp.maximum(h1, h2) @ fc_w.T + fc_b)[:, 0]
    assert out.shape == (batch,)
    assert jnp.allclose(out, ref, atol=1e-2), (out, ref)

    print("KERNEL_OK")
</pallas_src>

<mosaic_0001>
module attributes {stable_mosaic.version = 11 : i64} {
  func.func @cnn_kernel(%arg0: i32, %arg1: memref<2x128x1xi32, #tpu.memory_space<vmem>>, %arg2: memref<128x128xbf16, #tpu.memory_space<vmem>>, %arg3: memref<1x128xf32, #tpu.memory_space<vmem>>, %arg4: memref<1x128xf32, #tpu.memory_space<vmem>>) attributes {dimension_semantics = [#tpu.dimension_semantics<parallel>], iteration_bounds = array<i64: 1>, scalar_prefetch = 0 : i64, scratch_operands = 0 : i64, tpu.core_type = #tpu.core_type<tc>, window_params = [{transform_indices = @transform_0, window_bounds = array<i64: 2, 128, 1>}, {pipeline_mode = #tpu.pipeline_mode<synchronous>, transform_indices = @transform_1, window_bounds = array<i64: 128, 128>}, {pipeline_mode = #tpu.pipeline_mode<synchronous>, transform_indices = @transform_2, window_bounds = array<i64: 1, 128>}, {transform_indices = @transform_3, window_bounds = array<i64: 1, 128>}]} {
    %c0 = arith.constant 0 : index
    %c0_0 = arith.constant 0 : index
    %c0_1 = arith.constant 0 : index
    %0 = vector.load %arg1[%c0, %c0_0, %c0_1] : memref<2x128x1xi32, #tpu.memory_space<vmem>>, vector<1x128x1xi32>
    %1 = vector.shape_cast %0 : vector<1x128x1xi32> to vector<128x1xi32>
    %c1 = arith.constant 1 : index
    %c0_2 = arith.constant 0 : index
    %c0_3 = arith.constant 0 : index
    %2 = vector.load %arg1[%c1, %c0_2, %c0_3] : memref<2x128x1xi32, #tpu.memory_space<vmem>>, vector<1x128x1xi32>
    %3 = vector.shape_cast %2 : vector<1x128x1xi32> to vector<128x1xi32>
    %cst = arith.constant 0.000000e+00 : f32
    %4 = vector.broadcast %cst : f32 to vector<128x128xf32>
    %cst_4 = arith.constant 0.000000e+00 : f32
    %5 = vector.broadcast %cst_4 : f32 to vector<128x128xf32>
    %c0_5 = arith.constant 0 : index
    %c0_6 = arith.constant 0 : index
    %6 = vector.load %arg2[%c0_5, %c0_6] : memref<128x128xbf16, #tpu.memory_space<vmem>>, vector<128x128xbf16>
    %7 = tpu.iota {dimensions = array<i32: 1>} : vector<128x128xi32>
    %c0_i32 = arith.constant 0 : i32
    %8 = vector.broadcast %c0_i32 : i32 to vector<128x128xi32>
    %9 = arith.addi %7, %8 : vector<128x128xi32>
    %10 = vector.broadcast %1 : vector<128x1xi32> to vector<128x128xi32>
    %11 = arith.cmpi eq, %9, %10 : vector<128x128xi32>
    %12 = arith.extui %11 : vector<128x128xi1> to vector<128x128xi32>
    %13 = arith.sitofp %12 : vector<128x128xi32> to vector<128x128xf32>
    %14 = arith.truncf %13 : vector<128x128xf32> to vector<128x128xbf16>
    %15 = vector.broadcast %3 : vector<128x1xi32> to vector<128x128xi32>
    %16 = arith.cmpi eq, %9, %15 : vector<128x128xi32>
    %17 = arith.extui %16 : vector<128x128xi1> to vector<128x128xi32>
    %18 = arith.sitofp %17 : vector<128x128xi32> to vector<128x128xf32>
    %19 = arith.truncf %18 : vector<128x128xf32> to vector<128x128xbf16>
    %cst_7 = arith.constant dense<0.000000e+00> : vector<128x128xf32>
    %20 = tpu.matmul %14, %6, %cst_7 {dimension_numbers = #tpu.dot_dimension_numbers<[1], [0], [0], [1], [0, 0, 1, 1], [], []>} : vector<128x128xbf16>, vector<128x128xbf16>, vector<128x128xf32> -> vector<128x128xf32>
    %21 = arith.addf %4, %20 : vector<128x128xf32>
    %cst_8 = arith.constant dense<0.000000e+00> : vector<128x128xf32>
    %22 = tpu.matmul %19, %6, %cst_8 {dimension_numbers = #tpu.dot_dimension_numbers<[1], [0], [0], [1], [0, 0, 1, 1], [], []>} : vector<128x128xbf16>, vector<128x128xbf16>, vector<128x128xf32> -> vector<128x128xf32>
    %23 = arith.addf %5, %22 : vector<128x128xf32>
    %24 = arith.maximumf %21, %23 : vector<128x128xf32>
    %c0_9 = arith.constant 0 : index
    %c0_10 = arith.constant 0 : index
    %25 = vector.load %arg3[%c0_9, %c0_10] : memref<1x128xf32, #tpu.memory_space<vmem>>, vector<1x128xf32>
    %26 = vector.broadcast %25 : vector<1x128xf32> to vector<128x128xf32>
    %27 = arith.mulf %24, %26 : vector<128x128xf32>
    %cst_11 = arith.constant dense<0.000000e+00> : vector<128xf32>
    %28 = vector.multi_reduction <add>, %27, %cst_11 [1] : vector<128x128xf32> to vector<128xf32>
    %29 = arith.negf %28 : vector<128xf32>
    %30 = math.exp %29 : vector<128xf32>
    %cst_12 = arith.constant 1.000000e+00 : f32
    %31 = vector.broadcast %cst_12 : f32 to vector<128xf32>
    %32 = arith.addf %31, %30 : vector<128xf32>
    %33 = arith.divf %31, %32 : vector<128xf32>
    %34 = vector.shape_cast %33 : vector<128xf32> to vector<1x128xf32>
    %c0_13 = arith.constant 0 : index
    %c0_14 = arith.constant 0 : index
    %35 = vector.load %arg4[%c0_13, %c0_14] : memref<1x128xf32, #tpu.memory_space<vmem>>, vector<1x128xf32>
    tpu.vector_store %arg4[%c0_13, %c0_14], %34 {strides = array<i32>} : memref<1x128xf32, #tpu.memory_space<vmem>>, vector<1x128xf32>,
    return
  }
  func.func @transform_0(%arg0: i32) -> (i32, i32, i32) {
    %c0_i32 = arith.constant 0 : i32
    %c0_i32_0 = arith.constant 0 : i32
    %c0_i32_1 = arith.constant 0 : i32
    return %c0_i32, %arg0, %c0_i32_0 : i32, i32, i32
  }
  func.func @transform_1(%arg0: i32) -> (i32, i32) {
    %c0_i32 = arith.constant 0 : i32
    %c0_i32_0 = arith.constant 0 : i32
    %c0_i32_1 = arith.constant 0 : i32
    return %c0_i32, %c0_i32_0 : i32, i32
  }
  func.func @transform_2(%arg0: i32) -> (i32, i32) {
    %c0_i32 = arith.constant 0 : i32
    %c0_i32_0 = arith.constant 0 : i32
    %c0_i32_1 = arith.constant 0 : i32
    return %c0_i32, %c0_i32_0 : i32, i32
  }
  func.func @transform_3(%arg0: i32) -> (i32, i32) {
    %c0_i32 = arith.constant 0 : i32
    %c0_i32_0 = arith.constant 0 : i32
    return %c0_i32, %arg0 : i32, i32
  }
}

</mosaic_0001>

<llo_original>
// kernel: cnn_model_forward.1
$region0: #{cnn_model_forward.1}
  #allocation0 [shape = 'u32[]', space=smem, size = 0x4, offset = 0x4, fixed_abs, tag = 'smem constant byte address 0x4 - core index']
  #allocation1 [shape = 'u32[72,128]{1,0:T(1,128)}', space=vmem, size = 0x9000, scoped, tag = 'internal scratch']
  %s0 = inlined_call_operand.vmem [shape: s32[2,128,1], index: 0, kind: input, shape index: {}]
  %s1 = inlined_call_operand.vmem [shape: bf16[128,128], index: 1, kind: input, shape index: {}]
  %s2 = inlined_call_operand.vmem [shape: f32[1,128], index: 2, kind: input, shape index: {}]
  %s3 = inlined_call_operand.vmem [shape: f32[1,128], index: 3, kind: output, shape index: {}]
  %s4 = sld [smem:[#allocation0]]
  $region22: #{cnn_model_forward.1} parent=0
    _
  %s6 = ssub.s32 1, %s4
  %s7 = scalar_select 0, %s6, %s4
  // Predicated region
  $region2: #{cnn_model_forward.1} parent=0 // pred_check
    _
  $region3: #{cnn_model_forward.1} parent=0 // pred_check_branch
    %9 = sbr.rel (0) target = $region5
  $region4: #{cnn_model_forward.1} parent=0 // pred_region
    _
  $region5: #{cnn_model_forward.1} parent=0 // pred_fallthru
    _
  // Predicated region
  $region6: #{cnn_model_forward.1} parent=0 // pred_check
    _
  $region7: #{cnn_model_forward.1} parent=0 // pred_check_branch
    %11 = sbr.rel (0) target = $region9
  $region8: #{cnn_model_forward.1} parent=0 // pred_region
    _
  $region9: #{cnn_model_forward.1} parent=0 // pred_fallthru
    _
  // Predicated region
  $region10: #{cnn_model_forward.1} parent=0 // pred_check
    _
  $region11: #{cnn_model_forward.1} parent=0 // pred_check_branch
    %13 = sbr.rel (0) target = $region13
  $region12: #{cnn_model_forward.1} parent=0 // pred_region
    _
  $region13: #{cnn_model_forward.1} parent=0 // pred_fallthru
    _
  %v14 = vld [vmem:[%s0] sm:$0xff]
  %v15 = vld [vmem:[%s0 + $0x8] sm:$0xff]
  %v16 = vld [vmem:[%s0 + $0x10] sm:$0xff]
  %v17 = vld [vmem:[%s0 + $0x18] sm:$0xff]
  %v18 = vld [vmem:[%s0 + $0x20] sm:$0xff]
  %v19 = vld [vmem:[%s0 + $0x28] sm:$0xff]
  %v20 = vld [vmem:[%s0 + $0x30] sm:$0xff]
  %v21 = vld [vmem:[%s0 + $0x38] sm:$0xff]
  %v22 = vld [vmem:[%s0 + $0x40] sm:$0xff]
  %v23 = vld [vmem:[%s0 + $0x48] sm:$0xff]
  %v24 = vld [vmem:[%s0 + $0x50] sm:$0xff]
  %v25 = vld [vmem:[%s0 + $0x58] sm:$0xff]
  %v26 = vld [vmem:[%s0 + $0x60] sm:$0xff]
  %v27 = vld [vmem:[%s0 + $0x68] sm:$0xff]
  %v28 = vld [vmem:[%s0 + $0x70] sm:$0xff]
  %v29 = vld [vmem:[%s0 + $0x78] sm:$0xff]
  %s30 = scalar_lea.vmem %s0, 128
  %v31 = vld [vmem:[%s30] sm:$0xff]
  %v32 = vld [vmem:[%s30 + $0x8] sm:$0xff]
  %v33 = vld [vmem:[%s30 + $0x10] sm:$0xff]
  %v34 = vld [vmem:[%s30 + $0x18] sm:$0xff]
  %v35 = vld [vmem:[%s30 + $0x20] sm:$0xff]
  %v36 = vld [vmem:[%s30 + $0x28] sm:$0xff]
  %v37 = vld [vmem:[%s30 + $0x30] sm:$0xff]
  %v38 = vld [vmem:[%s30 + $0x38] sm:$0xff]
  %v39 = vld [vmem:[%s30 + $0x40] sm:$0xff]
  %v40 = vld [vmem:[%s30 + $0x48] sm:$0xff]
  %v41 = vld [vmem:[%s30 + $0x50] sm:$0xff]
  %v42 = vld [vmem:[%s30 + $0x58] sm:$0xff]
  %v43 = vld [vmem:[%s30 + $0x60] sm:$0xff]
  %v44 = vld [vmem:[%s30 + $0x68] sm:$0xff]
  %v45 = vld [vmem:[%s30 + $0x70] sm:$0xff]
  %v46 = vld [vmem:[%s30 + $0x78] sm:$0xff]
  %v47 = vld [vmem:[%s1] sm:$0xf]
  %v48 = vld [vmem:[%s1 + $0x4] sm:$0xf]
  %v49 = vld [vmem:[%s1 + $0x8] sm:$0xf]
  %v50 = vld [vmem:[%s1 + $0xc] sm:$0xf]
  %v51 = vld [vmem:[%s1 + $0x10] sm:$0xf]
  %v52 = vld [vmem:[%s1 + $0x14] sm:$0xf]
  %v53 = vld [vmem:[%s1 + $0x18] sm:$0xf]
  %v54 = vld [vmem:[%s1 + $0x1c] sm:$0xf]
  %v55 = vld [vmem:[%s1 + $0x20] sm:$0xf]
  %v56 = vld [vmem:[%s1 + $0x24] sm:$0xf]
  %v57 = vld [vmem:[%s1 + $0x28] sm:$0xf]
  %v58 = vld [vmem:[%s1 + $0x2c] sm:$0xf]
  %v59 = vld [vmem:[%s1 + $0x30] sm:$0xf]
  %v60 = vld [vmem:[%s1 + $0x34] sm:$0xf]
  %v61 = vld [vmem:[%s1 + $0x38] sm:$0xf]
  %v62 = vld [vmem:[%s1 + $0x3c] sm:$0xf]
  %v63 = vlaneseq
  %v64 = vand.u32 %v63, 127
  %65 = vset.pattern.permute.xlu0 0
  %66 = vperm.xlu0 %65, %v14
  %v67 = vpop.permute.xlu0 %66
  %68 = vset.pattern.permute.xlu0 0
  %69 = vperm.xlu0 %68, %v15
  %v70 = vpop.permute.xlu0 %69
  %71 = vset.pattern.permute.xlu0 0
  %72 = vperm.xlu0 %71, %v16
  %v73 = vpop.permute.xlu0 %72
  %74 = vset.pattern.permute.xlu0 0
  %75 = vperm.xlu0 %74, %v17
  %v76 = vpop.permute.xlu0 %75
  %77 = vset.pattern.permute.xlu0 0
  %78 = vperm.xlu0 %77, %v18
  %v79 = vpop.permute.xlu0 %78
  %80 = vset.pattern.permute.xlu0 0
  %81 = vperm.xlu0 %80, %v19
  %v82 = vpop.permute.xlu0 %81
  %83 = vset.pattern.permute.xlu0 0
  %84 = vperm.xlu0 %83, %v20
  %v85 = vpop.permute.xlu0 %84
  %86 = vset.pattern.permute.xlu0 0
  %87 = vperm.xlu0 %86, %v21
  %v88 = vpop.permute.xlu0 %87
  %89 = vset.pattern.permute.xlu0 0
  %90 = vperm.xlu0 %89, %v22
  %v91 = vpop.permute.xlu0 %90
  %92 = vset.pattern.permute.xlu0 0
  %93 = vperm.xlu0 %92, %v23
  %v94 = vpop.permute.xlu0 %93
  %95 = vset.pattern.permute.xlu0 0
  %96 = vperm.xlu0 %95, %v24
  %v97 = vpop.permute.xlu0 %96
  %98 = vset.pattern.permute.xlu0 0
  %99 = vperm.xlu0 %98, %v25
  %v100 = vpop.permute.xlu0 %99
  %101 = vset.pattern.permute.xlu0 0
  %102 = vperm.xlu0 %101, %v26
  %v103 = vpop.permute.xlu0 %102
  %104 = vset.pattern.permute.xlu0 0
  %105 = vperm.xlu0 %104, %v27
  %v106 = vpop.permute.xlu0 %105
  %107 = vset.pattern.permute.xlu0 0
  %108 = vperm.xlu0 %107, %v28
  %v109 = vpop.permute.xlu0 %108
  %110 = vset.pattern.permute.xlu0 0
  %111 = vperm.xlu0 %110, %v29
  %v112 = vpop.permute.xlu0 %111
  %vm113 = vcmp.eq.s32.totalorder %v64, %v67
  %vm114 = vcmp.eq.s32.totalorder %v64, %v70
  %vm115 = vcmp.eq.s32.totalorder %v64, %v73
  %vm116 = vcmp.eq.s32.totalorder %v64, %v76
  %vm117 = vcmp.eq.s32.totalorder %v64, %v79
  %vm118 = vcmp.eq.s32.totalorder %v64, %v82
  %vm119 = vcmp.eq.s32.totalorder %v64, %v85
  %vm120 = vcmp.eq.s32.totalorder %v64, %v88
  %vm121 = vcmp.eq.s32.totalorder %v64, %v91
  %vm122 = vcmp.eq.s32.totalorder %v64, %v94
  %vm123 = vcmp.eq.s32.totalorder %v64, %v97
  %vm124 = vcmp.eq.s32.totalorder %v64, %v100
  %vm125 = vcmp.eq.s32.totalorder %v64, %v103
  %vm126 = vcmp.eq.s32.totalorder %v64, %v106
  %vm127 = vcmp.eq.s32.totalorder %v64, %v109
  %vm128 = vcmp.eq.s32.totalorder %v64, %v112
  %v129 = vsel %vm113, 1, 0
  %v130 = vsel %vm114, 1, 0
  %v131 = vsel %vm115, 1, 0
  %v132 = vsel %vm116, 1, 0
  %v133 = vsel %vm117, 1, 0
  %v134 = vsel %vm118, 1, 0
  %v135 = vsel %vm119, 1, 0
  %v136 = vsel %vm120, 1, 0
  %v137 = vsel %vm121, 1, 0
  %v138 = vsel %vm122, 1, 0
  %v139 = vsel %vm123, 1, 0
  %v140 = vsel %vm124, 1, 0
  %v141 = vsel %vm125, 1, 0
  %v142 = vsel %vm126, 1, 0
  %v143 = vsel %vm127, 1, 0
  %v144 = vsel %vm128, 1, 0
  %v145 = vcvt.s32.f32 %v129
  %v146 = vcvt.s32.f32 %v130
  %v147 = vcvt.s32.f32 %v131
  %v148 = vcvt.s32.f32 %v132
  %v149 = vcvt.s32.f32 %v133
  %v150 = vcvt.s32.f32 %v134
  %v151 = vcvt.s32.f32 %v135
  %v152 = vcvt.s32.f32 %v136
  %v153 = vcvt.s32.f32 %v137
  %v154 = vcvt.s32.f32 %v138
  %v155 = vcvt.s32.f32 %v139
  %v156 = vcvt.s32.f32 %v140
  %v157 = vcvt.s32.f32 %v141
  %v158 = vcvt.s32.f32 %v142
  %v159 = vcvt.s32.f32 %v143
  %v160 = vcvt.s32.f32 %v144
  %v161 = vpack.c.bf16 %v146, %v145
  %v162 = vpack.c.bf16 %v148, %v147
  %v163 = vpack.c.bf16 %v150, %v149
  %v164 = vpack.c.bf16 %v152, %v151
  %v165 = vpack.c.bf16 %v154, %v153
  %v166 = vpack.c.bf16 %v156, %v155
  %v167 = vpack.c.bf16 %v158, %v157
  %v168 = vpack.c.bf16 %v160, %v159
  %169 = vset.pattern.permute.xlu0 0
  %170 = vperm.xlu0 %169, %v31
  %v171 = vpop.permute.xlu0 %170
  %172 = vset.pattern.permute.xlu0 0
  %173 = vperm.xlu0 %172, %v32
  %v174 = vpop.permute.xlu0 %173
  %175 = vset.pattern.permute.xlu0 0
  %176 = vperm.xlu0 %175, %v33
  %v177 = vpop.permute.xlu0 %176
  %178 = vset.pattern.permute.xlu0 0
  %179 = vperm.xlu0 %178, %v34
  %v180 = vpop.permute.xlu0 %179
  %181 = vset.pattern.permute.xlu0 0
  %182 = vperm.xlu0 %181, %v35
  %v183 = vpop.permute.xlu0 %182
  %184 = vset.pattern.permute.xlu0 0
  %185 = vperm.xlu0 %184, %v36
  %v186 = vpop.permute.xlu0 %185
  %187 = vset.pattern.permute.xlu0 0
  %188 = vperm.xlu0 %187, %v37
  %v189 = vpop.permute.xlu0 %188
  %190 = vset.pattern.permute.xlu0 0
  %191 = vperm.xlu0 %190, %v38
  %v192 = vpop.permute.xlu0 %191
  %193 = vset.pattern.permute.xlu0 0
  %194 = vperm.xlu0 %193, %v39
  %v195 = vpop.permute.xlu0 %194
  %196 = vset.pattern.permute.xlu0 0
  %197 = vperm.xlu0 %196, %v40
  %v198 = vpop.permute.xlu0 %197
  %199 = vset.pattern.permute.xlu0 0
  %200 = vperm.xlu0 %199, %v41
  %v201 = vpop.permute.xlu0 %200
  %202 = vset.pattern.permute.xlu0 0
  %203 = vperm.xlu0 %202, %v42
  %v204 = vpop.permute.xlu0 %203
  %205 = vset.pattern.permute.xlu0 0
  %206 = vperm.xlu0 %205, %v43
  %v207 = vpop.permute.xlu0 %206
  %208 = vset.pattern.permute.xlu0 0
  %209 = vperm.xlu0 %208, %v44
  %v210 = vpop.permute.xlu0 %209
  %211 = vset.pattern.permute.xlu0 0
  %212 = vperm.xlu0 %211, %v45
  %v213 = vpop.permute.xlu0 %212
  %214 = vset.pattern.permute.xlu0 0
  %215 = vperm.xlu0 %214, %v46
  %v216 = vpop.permute.xlu0 %215
  %vm217 = vcmp.eq.s32.totalorder %v64, %v171
  %vm218 = vcmp.eq.s32.totalorder %v64, %v174
  %vm219 = vcmp.eq.s32.totalorder %v64, %v177
  %vm220 = vcmp.eq.s32.totalorder %v64, %v180
  %vm221 = vcmp.eq.s32.totalorder %v64, %v183
  %vm222 = vcmp.eq.s32.totalorder %v64, %v186
  %vm223 = vcmp.eq.s32.totalorder %v64, %v189
  %vm224 = vcmp.eq.s32.totalorder %v64, %v192
  %vm225 = vcmp.eq.s32.totalorder %v64, %v195
  %vm226 = vcmp.eq.s32.totalorder %v64, %v198
  %vm227 = vcmp.eq.s32.totalorder %v64, %v201
  %vm228 = vcmp.eq.s32.totalorder %v64, %v204
  %vm229 = vcmp.eq.s32.totalorder %v64, %v207
  %vm230 = vcmp.eq.s32.totalorder %v64, %v210
  %vm231 = vcmp.eq.s32.totalorder %v64, %v213
  %vm232 = vcmp.eq.s32.totalorder %v64, %v216
  %v233 = vsel %vm217, 1, 0
  %v234 = vsel %vm218, 1, 0
  %v235 = vsel %vm219, 1, 0
  %v236 = vsel %vm220, 1, 0
  %v237 = vsel %vm221, 1, 0
  %v238 = vsel %vm222, 1, 0
  %v239 = vsel %vm223, 1, 0
  %v240 = vsel %vm224, 1, 0
  %v241 = vsel %vm225, 1, 0
  %v242 = vsel %vm226, 1, 0
  %v243 = vsel %vm227, 1, 0
  %v244 = vsel %vm228, 1, 0
  %v245 = vsel %vm229, 1, 0
  %v246 = vsel %vm230, 1, 0
  %v247 = vsel %vm231, 1, 0
  %v248 = vsel %vm232, 1, 0
  %v249 = vcvt.s32.f32 %v233
  %v250 = vcvt.s32.f32 %v234
  %v251 = vcvt.s32.f32 %v235
  %v252 = vcvt.s32.f32 %v236
  %v253 = vcvt.s32.f32 %v237
  %v254 = vcvt.s32.f32 %v238
  %v255 = vcvt.s32.f32 %v239
  %v256 = vcvt.s32.f32 %v240
  %v257 = vcvt.s32.f32 %v241
  %v258 = vcvt.s32.f32 %v242
  %v259 = vcvt.s32.f32 %v243
  %v260 = vcvt.s32.f32 %v244
  %v261 = vcvt.s32.f32 %v245
  %v262 = vcvt.s32.f32 %v246
  %v263 = vcvt.s32.f32 %v247
  %v264 = vcvt.s32.f32 %v248
  %v265 = vpack.c.bf16 %v250, %v249
  %v266 = vpack.c.bf16 %v252, %v251
  %v267 = vpack.c.bf16 %v254, %v253
  %v268 = vpack.c.bf16 %v256, %v255
  %v269 = vpack.c.bf16 %v258, %v257
  %v270 = vpack.c.bf16 %v260, %v259
  %v271 = vpack.c.bf16 %v262, %v261
  %v272 = vpack.c.bf16 %v264, %v263
  %v289 = vunpack.c.l.b16 %v47
  %v290 = vunpack.c.l.b16 %v48
  %v291 = vunpack.c.l.b16 %v49
  %v292 = vunpack.c.l.b16 %v50
  %v293 = vunpack.c.l.b16 %v51
  %v294 = vunpack.c.l.b16 %v52
  %v295 = vunpack.c.l.b16 %v53
  %v296 = vunpack.c.l.b16 %v54
  %v297 = vunpack.c.l.b16 %v55
  %v298 = vunpack.c.l.b16 %v56
  %v299 = vunpack.c.l.b16 %v57
  %v300 = vunpack.c.l.b16 %v58
  %v301 = vunpack.c.l.b16 %v59
  %v302 = vunpack.c.l.b16 %v60
  %v303 = vunpack.c.l.b16 %v61
  %v304 = vunpack.c.l.b16 %v62
  %v305 = vpack.c.b16 %v290, %v289
  %v306 = vpack.c.b16 %v292, %v291
  %v307 = vpack.c.b16 %v294, %v293
  %v308 = vpack.c.b16 %v296, %v295
  %v309 = vpack.c.b16 %v298, %v297
  %v310 = vpack.c.b16 %v300, %v299
  %v311 = vpack.c.b16 %v302, %v301
  %v312 = vpack.c.b16 %v304, %v303
  %321 = vmatpush.bf16.msra.mxu0 %v312
  %322 = vmatpush.bf16.msra.mxu0 %v311
  %323 = vmatpush.bf16.msra.mxu0 %v310
  %324 = vmatpush.bf16.msra.mxu0 %v309
  %325 = vmatpush.bf16.msra.mxu0 %v308
  %326 = vmatpush.bf16.msra.mxu0 %v307
  %327 = vmatpush.bf16.msra.mxu0 %v306
  %328 = vmatpush.bf16.msra.mxu0 %v305
  %329 = vmatmul.bf16.gmra.mxu0 %v161
  %v330 = vpop.f32.mrf.mxu0
  %v331 = vadd.f32 0.0, %v330
  %v332 = vpop.f32.mrf.mxu0
  %v333 = vadd.f32 0.0, %v332
  %334 = vmatmul.bf16.gmra.mxu0 %v162
  %v335 = vpop.f32.mrf.mxu0
  %v336 = vadd.f32 0.0, %v335
  %v337 = vpop.f32.mrf.mxu0
  %v338 = vadd.f32 0.0, %v337
  %339 = vmatmul.bf16.gmra.mxu0 %v163
  %v340 = vpop.f32.mrf.mxu0
  %v341 = vadd.f32 0.0, %v340
  %v342 = vpop.f32.mrf.mxu0
  %v343 = vadd.f32 0.0, %v342
  %344 = vmatmul.bf16.gmra.mxu0 %v164
  %v345 = vpop.f32.mrf.mxu0
  %v346 = vadd.f32 0.0, %v345
  %v347 = vpop.f32.mrf.mxu0
  %v348 = vadd.f32 0.0, %v347
  %349 = vmatmul.bf16.gmra.mxu0 %v165
  %v350 = vpop.f32.mrf.mxu0
  %v351 = vadd.f32 0.0, %v350
  %v352 = vpop.f32.mrf.mxu0
  %v353 = vadd.f32 0.0, %v352
  %354 = vmatmul.bf16.gmra.mxu0 %v166
  %v355 = vpop.f32.mrf.mxu0
  %v356 = vadd.f32 0.0, %v355
  %v357 = vpop.f32.mrf.mxu0
  %v358 = vadd.f32 0.0, %v357
  %359 = vmatmul.bf16.gmra.mxu0 %v167
  %v360 = vpop.f32.mrf.mxu0
  %v361 = vadd.f32 0.0, %v360
  %v362 = vpop.f32.mrf.mxu0
  %v363 = vadd.f32 0.0, %v362
  %364 = vmatmul.bf16.gmra.mxu0 %v168
  %v365 = vpop.f32.mrf.mxu0
  %v366 = vadd.f32 0.0, %v365
  %v367 = vpop.f32.mrf.mxu0
  %v368 = vadd.f32 0.0, %v367
  %369 = vdwg.mxu0
  %370 = vmatpush.bf16.msra.mxu0 %v312
  %371 = vmatpush.bf16.msra.mxu0 %v311
  %372 = vmatpush.bf16.msra.mxu0 %v310
  %373 = vmatpush.bf16.msra.mxu0 %v309
  %374 = vmatpush.bf16.msra.mxu0 %v308
  %375 = vmatpush.bf16.msra.mxu0 %v307
  %376 = vmatpush.bf16.msra.mxu0 %v306
  %377 = vmatpush.bf16.msra.mxu0 %v305
  %378 = vmatmul.bf16.gmra.mxu0 %v265
  %v379 = vpop.f32.mrf.mxu0
  %v380 = vadd.f32 0.0, %v379
  %v381 = vpop.f32.mrf.mxu0
  %v382 = vadd.f32 0.0, %v381
  %383 = vmatmul.bf16.gmra.mxu0 %v266
  %v384 = vpop.f32.mrf.mxu0
  %v385 = vadd.f32 0.0, %v384
  %v386 = vpop.f32.mrf.mxu0
  %v387 = vadd.f32 0.0, %v386
  %388 = vmatmul.bf16.gmra.mxu0 %v267
  %v389 = vpop.f32.mrf.mxu0
  %v390 = vadd.f32 0.0, %v389
  %v391 = vpop.f32.mrf.mxu0
  %v392 = vadd.f32 0.0, %v391
  %393 = vmatmul.bf16.gmra.mxu0 %v268
  %v394 = vpop.f32.mrf.mxu0
  %v395 = vadd.f32 0.0, %v394
  %v396 = vpop.f32.mrf.mxu0
  %v397 = vadd.f32 0.0, %v396
  %398 = vmatmul.bf16.gmra.mxu0 %v269
  %v399 = vpop.f32.mrf.mxu0
  %v400 = vadd.f32 0.0, %v399
  %v401 = vpop.f32.mrf.mxu0
  %v402 = vadd.f32 0.0, %v401
  %403 = vmatmul.bf16.gmra.mxu0 %v270
  %v404 = vpop.f32.mrf.mxu0
  %v405 = vadd.f32 0.0, %v404
  %v406 = vpop.f32.mrf.mxu0
  %v407 = vadd.f32 0.0, %v406
  %408 = vmatmul.bf16.gmra.mxu0 %v271
  %v409 = vpop.f32.mrf.mxu0
  %v410 = vadd.f32 0.0, %v409
  %v411 = vpop.f32.mrf.mxu0
  %v412 = vadd.f32 0.0, %v411
  %413 = vmatmul.bf16.gmra.mxu0 %v272
  %v414 = vpop.f32.mrf.mxu0
  %v415 = vadd.f32 0.0, %v414
  %v416 = vpop.f32.mrf.mxu0
  %v417 = vadd.f32 0.0, %v416
  %418 = vdwg.mxu0
  %v419 = vmax.f32 %v331, %v380
  %v420 = vmax.f32 %v333, %v382
  %v421 = vmax.f32 %v336, %v385
  %v422 = vmax.f32 %v338, %v387
  %v423 = vmax.f32 %v341, %v390
  %v424 = vmax.f32 %v343, %v392
  %v425 = vmax.f32 %v346, %v395
  %v426 = vmax.f32 %v348, %v397
  %v427 = vmax.f32 %v351, %v400
  %v428 = vmax.f32 %v353, %v402
  %v429 = vmax.f32 %v356, %v405
  %v430 = vmax.f32 %v358, %v407
  %v431 = vmax.f32 %v361, %v410
  %v432 = vmax.f32 %v363, %v412
  %v433 = vmax.f32 %v366, %v415
  %v434 = vmax.f32 %v368, %v417
  %v435 = vld [vmem:[%s2] sm:$0x1]
  %v437 = vperm.slane %v435, 0
  %v439 = vmul.f32 %v419, %v437
  %v440 = vmul.f32 %v420, %v437
  %v441 = vmul.f32 %v421, %v437
  %v442 = vmul.f32 %v422, %v437
  %v443 = vmul.f32 %v423, %v437
  %v444 = vmul.f32 %v424, %v437
  %v445 = vmul.f32 %v425, %v437
  %v446 = vmul.f32 %v426, %v437
  %v447 = vmul.f32 %v427, %v437
  %v448 = vmul.f32 %v428, %v437
  %v449 = vmul.f32 %v429, %v437
  %v450 = vmul.f32 %v430, %v437
  %v451 = vmul.f32 %v431, %v437
  %v452 = vmul.f32 %v432, %v437
  %v453 = vmul.f32 %v433, %v437
  %v454 = vmul.f32 %v434, %v437
  %455 = vadd.xlane.f32.xlu0 %v439
  %v456 = vpop.xlane.xlu0 %455
  %457 = vadd.xlane.f32.xlu0 %v440
  %v458 = vpop.xlane.xlu0 %457
  %459 = vadd.xlane.f32.xlu0 %v441
  %v460 = vpop.xlane.xlu0 %459
  %461 = vadd.xlane.f32.xlu0 %v442
  %v462 = vpop.xlane.xlu0 %461
  %463 = vadd.xlane.f32.xlu0 %v443
  %v464 = vpop.xlane.xlu0 %463
  %465 = vadd.xlane.f32.xlu0 %v444
  %v466 = vpop.xlane.xlu0 %465
  %467 = vadd.xlane.f32.xlu0 %v445
  %v468 = vpop.xlane.xlu0 %467
  %469 = vadd.xlane.f32.xlu0 %v446
  %v470 = vpop.xlane.xlu0 %469
  %471 = vadd.xlane.f32.xlu0 %v447
  %v472 = vpop.xlane.xlu0 %471
  %473 = vadd.xlane.f32.xlu0 %v448
  %v474 = vpop.xlane.xlu0 %473
  %475 = vadd.xlane.f32.xlu0 %v449
  %v476 = vpop.xlane.xlu0 %475
  %477 = vadd.xlane.f32.xlu0 %v450
  %v478 = vpop.xlane.xlu0 %477
  %479 = vadd.xlane.f32.xlu0 %v451
  %v480 = vpop.xlane.xlu0 %479
  %481 = vadd.xlane.f32.xlu0 %v452
  %v482 = vpop.xlane.xlu0 %481
  %483 = vadd.xlane.f32.xlu0 %v453
  %v484 = vpop.xlane.xlu0 %483
  %485 = vadd.xlane.f32.xlu0 %v454
  %v486 = vpop.xlane.xlu0 %485
  %v487 = vxor.u32 %v456, 2147483648
  %v488 = vxor.u32 %v458, 2147483648
  %v489 = vxor.u32 %v460, 2147483648
  %v490 = vxor.u32 %v462, 2147483648
  %v491 = vxor.u32 %v464, 2147483648
  %v492 = vxor.u32 %v466, 2147483648
  %v493 = vxor.u32 %v468, 2147483648
  %v494 = vxor.u32 %v470, 2147483648
  %v495 = vxor.u32 %v472, 2147483648
  %v496 = vxor.u32 %v474, 2147483648
  %v497 = vxor.u32 %v476, 2147483648
  %v498 = vxor.u32 %v478, 2147483648
  %v499 = vxor.u32 %v480, 2147483648
  %v500 = vxor.u32 %v482, 2147483648
  %v501 = vxor.u32 %v484, 2147483648
  %v502 = vxor.u32 %v486, 2147483648
  %v503 = vmul.f32 %v487, 1.442695
  %v504 = vpow.pop %v503
  %v505 = vmul.f32 %v488, 1.442695
  %v506 = vpow.pop %v505
  %v507 = vmul.f32 %v489, 1.442695
  %v508 = vpow.pop %v507
  %v509 = vmul.f32 %v490, 1.442695
  %v510 = vpow.pop %v509
  %v511 = vmul.f32 %v491, 1.442695
  %v512 = vpow.pop %v511
  %v513 = vmul.f32 %v492, 1.442695
  %v514 = vpow.pop %v513
  %v515 = vmul.f32 %v493, 1.442695
  %v516 = vpow.pop %v515
  %v517 = vmul.f32 %v494, 1.442695
  %v518 = vpow.pop %v517
  %v519 = vmul.f32 %v495, 1.442695
  %v520 = vpow.pop %v519
  %v521 = vmul.f32 %v496, 1.442695
  %v522 = vpow.pop %v521
  %v523 = vmul.f32 %v497, 1.442695
  %v524 = vpow.pop %v523
  %v525 = vmul.f32 %v498, 1.442695
  %v526 = vpow.pop %v525
  %v527 = vmul.f32 %v499, 1.442695
  %v528 = vpow.pop %v527
  %v529 = vmul.f32 %v500, 1.442695
  %v530 = vpow.pop %v529
  %v531 = vmul.f32 %v501, 1.442695
  %v532 = vpow.pop %v531
  %v533 = vmul.f32 %v502, 1.442695
  %v534 = vpow.pop %v533
  %v535 = vadd.f32 %v504, 1.0
  %v536 = vadd.f32 %v506, 1.0
  %v537 = vadd.f32 %v508, 1.0
  %v538 = vadd.f32 %v510, 1.0
  %v539 = vadd.f32 %v512, 1.0
  %v540 = vadd.f32 %v514, 1.0
  %v541 = vadd.f32 %v516, 1.0
  %v542 = vadd.f32 %v518, 1.0
  %v543 = vadd.f32 %v520, 1.0
  %v544 = vadd.f32 %v522, 1.0
  %v545 = vadd.f32 %v524, 1.0
  %v546 = vadd.f32 %v526, 1.0
  %v547 = vadd.f32 %v528, 1.0
  %v548 = vadd.f32 %v530, 1.0
  %v549 = vadd.f32 %v532, 1.0
  %v550 = vadd.f32 %v534, 1.0
  %v551 = vrcp.pop %v535
  %v552 = vmul.f32 %v535, %v551
  %v553 = vsub.f32 1.0, %v552
  %v554 = vmul.f32 %v551, %v553
  %v555 = vadd.f32 %v551, %v554
  %vm556 = vweird.f32 %v535
  %vm557 = vweird.f32 %v551
  %vm558 = vmor %vm556, %vm557
  %v559 = vsel %vm558, %v551, %v555
  %v560 = vand.u32 2147483647, %v535
  %vm561 = vcmp.eq.f32.partialorder %v560, 8.507059e+37
  %v562 = vand.u32 %v535, 2147483648
  %v563 = vor.u32 1.1754944e-38, %v562
  %v564 = vsel %vm561, %v563, %v559
  %v565 = vmul.f32 1.0, %v564
  %v566 = vrcp.pop %v536
  %v567 = vmul.f32 %v536, %v566
  %v568 = vsub.f32 1.0, %v567
  %v569 = vmul.f32 %v566, %v568
  %v570 = vadd.f32 %v566, %v569
  %vm571 = vweird.f32 %v536
  %vm572 = vweird.f32 %v566
  %vm573 = vmor %vm571, %vm572
  %v574 = vsel %vm573, %v566, %v570
  %v575 = vand.u32 2147483647, %v536
  %vm576 = vcmp.eq.f32.partialorder %v575, 8.507059e+37
  %v577 = vand.u32 %v536, 2147483648
  %v578 = vor.u32 1.1754944e-38, %v577
  %v579 = vsel %vm576, %v578, %v574
  %v580 = vmul.f32 1.0, %v579
  %v581 = vrcp.pop %v537
  %v582 = vmul.f32 %v537, %v581
  %v583 = vsub.f32 1.0, %v582
  %v584 = vmul.f32 %v581, %v583
  %v585 = vadd.f32 %v581, %v584
  %vm586 = vweird.f32 %v537
  %vm587 = vweird.f32 %v581
  %vm588 = vmor %vm586, %vm587
  %v589 = vsel %vm588, %v581, %v585
  %v590 = vand.u32 2147483647, %v537
  %vm591 = vcmp.eq.f32.partialorder %v590, 8.507059e+37
  %v592 = vand.u32 %v537, 2147483648
  %v593 = vor.u32 1.1754944e-38, %v592
  %v594 = vsel %vm591, %v593, %v589
  %v595 = vmul.f32 1.0, %v594
  %v596 = vrcp.pop %v538
  %v597 = vmul.f32 %v538, %v596
  %v598 = vsub.f32 1.0, %v597
  %v599 = vmul.f32 %v596, %v598
  %v600 = vadd.f32 %v596, %v599
  %vm601 = vweird.f32 %v538
  %vm602 = vweird.f32 %v596
  %vm603 = vmor %vm601, %vm602
  %v604 = vsel %vm603, %v596, %v600
  %v605 = vand.u32 2147483647, %v538
  %vm606 = vcmp.eq.f32.partialorder %v605, 8.507059e+37
  %v607 = vand.u32 %v538, 2147483648
  %v608 = vor.u32 1.1754944e-38, %v607
  %v609 = vsel %vm606, %v608, %v604
  %v610 = vmul.f32 1.0, %v609
  %v611 = vrcp.pop %v539
  %v612 = vmul.f32 %v539, %v611
  %v613 = vsub.f32 1.0, %v612
  %v614 = vmul.f32 %v611, %v613
  %v615 = vadd.f32 %v611, %v614
  %vm616 = vweird.f32 %v539
  %vm617 = vweird.f32 %v611
  %vm618 = vmor %vm616, %vm617
  %v619 = vsel %vm618, %v611, %v615
  %v620 = vand.u32 2147483647, %v539
  %vm621 = vcmp.eq.f32.partialorder %v620, 8.507059e+37
  %v622 = vand.u32 %v539, 2147483648
  %v623 = vor.u32 1.1754944e-38, %v622
  %v624 = vsel %vm621, %v623, %v619
  %v625 = vmul.f32 1.0, %v624
  %v626 = vrcp.pop %v540
  %v627 = vmul.f32 %v540, %v626
  %v628 = vsub.f32 1.0, %v627
  %v629 = vmul.f32 %v626, %v628
  %v630 = vadd.f32 %v626, %v629
  %vm631 = vweird.f32 %v540
  %vm632 = vweird.f32 %v626
  %vm633 = vmor %vm631, %vm632
  %v634 = vsel %vm633, %v626, %v630
  %v635 = vand.u32 2147483647, %v540
  %vm636 = vcmp.eq.f32.partialorder %v635, 8.507059e+37
  %v637 = vand.u32 %v540, 2147483648
  %v638 = vor.u32 1.1754944e-38, %v637
  %v639 = vsel %vm636, %v638, %v634
  %v640 = vmul.f32 1.0, %v639
  %v641 = vrcp.pop %v541
  %v642 = vmul.f32 %v541, %v641
  %v643 = vsub.f32 1.0, %v642
  %v644 = vmul.f32 %v641, %v643
  %v645 = vadd.f32 %v641, %v644
  %vm646 = vweird.f32 %v541
  %vm647 = vweird.f32 %v641
  %vm648 = vmor %vm646, %vm647
  %v649 = vsel %vm648, %v641, %v645
  %v650 = vand.u32 2147483647, %v541
  %vm651 = vcmp.eq.f32.partialorder %v650, 8.507059e+37
  %v652 = vand.u32 %v541, 2147483648
  %v653 = vor.u32 1.1754944e-38, %v652
  %v654 = vsel %vm651, %v653, %v649
  %v655 = vmul.f32 1.0, %v654
  %v656 = vrcp.pop %v542
  %v657 = vmul.f32 %v542, %v656
  %v658 = vsub.f32 1.0, %v657
  %v659 = vmul.f32 %v656, %v658
  %v660 = vadd.f32 %v656, %v659
  %vm661 = vweird.f32 %v542
  %vm662 = vweird.f32 %v656
  %vm663 = vmor %vm661, %vm662
  %v664 = vsel %vm663, %v656, %v660
  %v665 = vand.u32 2147483647, %v542
  %vm666 = vcmp.eq.f32.partialorder %v665, 8.507059e+37
  %v667 = vand.u32 %v542, 2147483648
  %v668 = vor.u32 1.1754944e-38, %v667
  %v669 = vsel %vm666, %v668, %v664
  %v670 = vmul.f32 1.0, %v669
  %v671 = vrcp.pop %v543
  %v672 = vmul.f32 %v543, %v671
  %v673 = vsub.f32 1.0, %v672
  %v674 = vmul.f32 %v671, %v673
  %v675 = vadd.f32 %v671, %v674
  %vm676 = vweird.f32 %v543
  %vm677 = vweird.f32 %v671
  %vm678 = vmor %vm676, %vm677
  %v679 = vsel %vm678, %v671, %v675
  %v680 = vand.u32 2147483647, %v543
  %vm681 = vcmp.eq.f32.partialorder %v680, 8.507059e+37
  %v682 = vand.u32 %v543, 2147483648
  %v683 = vor.u32 1.1754944e-38, %v682
  %v684 = vsel %vm681, %v683, %v679
  %v685 = vmul.f32 1.0, %v684
  %v686 = vrcp.pop %v544
  %v687 = vmul.f32 %v544, %v686
  %v688 = vsub.f32 1.0, %v687
  %v689 = vmul.f32 %v686, %v688
  %v690 = vadd.f32 %v686, %v689
  %vm691 = vweird.f32 %v544
  %vm692 = vweird.f32 %v686
  %vm693 = vmor %vm691, %vm692
  %v694 = vsel %vm693, %v686, %v690
  %v695 = vand.u32 2147483647, %v544
  %vm696 = vcmp.eq.f32.partialorder %v695, 8.507059e+37
  %v697 = vand.u32 %v544, 2147483648
  %v698 = vor.u32 1.1754944e-38, %v697
  %v699 = vsel %vm696, %v698, %v694
  %v700 = vmul.f32 1.0, %v699
  %v701 = vrcp.pop %v545
  %v702 = vmul.f32 %v545, %v701
  %v703 = vsub.f32 1.0, %v702
  %v704 = vmul.f32 %v701, %v703
  %v705 = vadd.f32 %v701, %v704
  %vm706 = vweird.f32 %v545
  %vm707 = vweird.f32 %v701
  %vm708 = vmor %vm706, %vm707
  %v709 = vsel %vm708, %v701, %v705
  %v710 = vand.u32 2147483647, %v545
  %vm711 = vcmp.eq.f32.partialorder %v710, 8.507059e+37
  %v712 = vand.u32 %v545, 2147483648
  %v713 = vor.u32 1.1754944e-38, %v712
  %v714 = vsel %vm711, %v713, %v709
  %v715 = vmul.f32 1.0, %v714
  %v716 = vrcp.pop %v546
  %v717 = vmul.f32 %v546, %v716
  %v718 = vsub.f32 1.0, %v717
  %v719 = vmul.f32 %v716, %v718
  %v720 = vadd.f32 %v716, %v719
  %vm721 = vweird.f32 %v546
  %vm722 = vweird.f32 %v716
  %vm723 = vmor %vm721, %vm722
  %v724 = vsel %vm723, %v716, %v720
  %v725 = vand.u32 2147483647, %v546
  %vm726 = vcmp.eq.f32.partialorder %v725, 8.507059e+37
  %v727 = vand.u32 %v546, 2147483648
  %v728 = vor.u32 1.1754944e-38, %v727
  %v729 = vsel %vm726, %v728, %v724
  %v730 = vmul.f32 1.0, %v729
  %v731 = vrcp.pop %v547
  %v732 = vmul.f32 %v547, %v731
  %v733 = vsub.f32 1.0, %v732
  %v734 = vmul.f32 %v731, %v733
  %v735 = vadd.f32 %v731, %v734
  %vm736 = vweird.f32 %v547
  %vm737 = vweird.f32 %v731
  %vm738 = vmor %vm736, %vm737
  %v739 = vsel %vm738, %v731, %v735
  %v740 = vand.u32 2147483647, %v547
  %vm741 = vcmp.eq.f32.partialorder %v740, 8.507059e+37
  %v742 = vand.u32 %v547, 2147483648
  %v743 = vor.u32 1.1754944e-38, %v742
  %v744 = vsel %vm741, %v743, %v739
  %v745 = vmul.f32 1.0, %v744
  %v746 = vrcp.pop %v548
  %v747 = vmul.f32 %v548, %v746
  %v748 = vsub.f32 1.0, %v747
  %v749 = vmul.f32 %v746, %v748
  %v750 = vadd.f32 %v746, %v749
  %vm751 = vweird.f32 %v548
  %vm752 = vweird.f32 %v746
  %vm753 = vmor %vm751, %vm752
  %v754 = vsel %vm753, %v746, %v750
  %v755 = vand.u32 2147483647, %v548
  %vm756 = vcmp.eq.f32.partialorder %v755, 8.507059e+37
  %v757 = vand.u32 %v548, 2147483648
  %v758 = vor.u32 1.1754944e-38, %v757
  %v759 = vsel %vm756, %v758, %v754
  %v760 = vmul.f32 1.0, %v759
  %v761 = vrcp.pop %v549
  %v762 = vmul.f32 %v549, %v761
  %v763 = vsub.f32 1.0, %v762
  %v764 = vmul.f32 %v761, %v763
  %v765 = vadd.f32 %v761, %v764
  %vm766 = vweird.f32 %v549
  %vm767 = vweird.f32 %v761
  %vm768 = vmor %vm766, %vm767
  %v769 = vsel %vm768, %v761, %v765
  %v770 = vand.u32 2147483647, %v549
  %vm771 = vcmp.eq.f32.partialorder %v770, 8.507059e+37
  %v772 = vand.u32 %v549, 2147483648
  %v773 = vor.u32 1.1754944e-38, %v772
  %v774 = vsel %vm771, %v773, %v769
  %v775 = vmul.f32 1.0, %v774
  %v776 = vrcp.pop %v550
  %v777 = vmul.f32 %v550, %v776
  %v778 = vsub.f32 1.0, %v777
  %v779 = vmul.f32 %v776, %v778
  %v780 = vadd.f32 %v776, %v779
  %vm781 = vweird.f32 %v550
  %vm782 = vweird.f32 %v776
  %vm783 = vmor %vm781, %vm782
  %v784 = vsel %vm783, %v776, %v780
  %v785 = vand.u32 2147483647, %v550
  %vm786 = vcmp.eq.f32.partialorder %v785, 8.507059e+37
  %v787 = vand.u32 %v550, 2147483648
  %v788 = vor.u32 1.1754944e-38, %v787
  %v789 = vsel %vm786, %v788, %v784
  %v790 = vmul.f32 1.0, %v789
  %v807 = vperm.slane %v565, %v64
  %v808 = vadd.s32 %v64, 4294967288
  %v809 = vperm.slane %v580, %v808
  %vm810 = vcmask 130112
  %v811 = vsel %vm810, %v809, %v807
  %v812 = vadd.s32 %v64, 4294967280
  %v813 = vperm.slane %v595, %v812
  %vm814 = vcmask 195712
  %v815 = vsel %vm814, %v813, %v811
  %v816 = vadd.s32 %v64, 4294967272
  %v817 = vperm.slane %v610, %v816
  %vm818 = vcmask 261312
  %v819 = vsel %vm818, %v817, %v815
  %v820 = vadd.s32 %v64, 4294967264
  %v821 = vperm.slane %v625, %v820
  %vm822 = vcmask 326912
  %v823 = vsel %vm822, %v821, %v819
  %v824 = vadd.s32 %v64, 4294967256
  %v825 = vperm.slane %v640, %v824
  %vm826 = vcmask 392512
  %v827 = vsel %vm826, %v825, %v823
  %v828 = vadd.s32 %v64, 4294967248
  %v829 = vperm.slane %v655, %v828
  %vm830 = vcmask 458112
  %v831 = vsel %vm830, %v829, %v827
  %v832 = vadd.s32 %v64, 4294967240
  %v833 = vperm.slane %v670, %v832
  %vm834 = vcmask 523712
  %v835 = vsel %vm834, %v833, %v831
  %v836 = vadd.s32 %v64, 4294967232
  %v837 = vperm.slane %v685, %v836
  %vm838 = vcmask 589312
  %v839 = vsel %vm838, %v837, %v835
  %v840 = vadd.s32 %v64, 4294967224
  %v841 = vperm.slane %v700, %v840
  %vm842 = vcmask 654912
  %v843 = vsel %vm842, %v841, %v839
  %v844 = vadd.s32 %v64, 4294967216
  %v845 = vperm.slane %v715, %v844
  %vm846 = vcmask 720512
  %v847 = vsel %vm846, %v845, %v843
  %v848 = vadd.s32 %v64, 4294967208
  %v849 = vperm.slane %v730, %v848
  %vm850 = vcmask 786112
  %v851 = vsel %vm850, %v849, %v847
  %v852 = vadd.s32 %v64, 4294967200
  %v853 = vperm.slane %v745, %v852
  %vm854 = vcmask 851712
  %v855 = vsel %vm854, %v853, %v851
  %v856 = vadd.s32 %v64, 4294967192
  %v857 = vperm.slane %v760, %v856
  %vm858 = vcmask 917312
  %v859 = vsel %vm858, %v857, %v855
  %v860 = vadd.s32 %v64, 4294967184
  %v861 = vperm.slane %v775, %v860
  %vm862 = vcmask 982912
  %v863 = vsel %vm862, %v861, %v859
  %v864 = vadd.s32 %v64, 4294967176
  %v865 = vperm.slane %v790, %v864
  %vm866 = vcmask 1048512
  %v867 = vsel %vm866, %v865, %v863
  %869 = vst [vmem:[%s3] sm:$0x1] %v867
  // Predicated region
  $region14: #{cnn_model_forward.1} parent=0 // pred_check
    _
  $region15: #{cnn_model_forward.1} parent=0 // pred_check_branch
    %871 = sbr.rel (0) target = $region17
  $region16: #{cnn_model_forward.1} parent=0 // pred_region
    _
  $region17: #{cnn_model_forward.1} parent=0 // pred_fallthru
    _
  // Predicated region
  $region18: #{cnn_model_forward.1} parent=0 // pred_check
    _
  $region19: #{cnn_model_forward.1} parent=0 // pred_check_branch
    %873 = sbr.rel (0) target = $region21
  $region20: #{cnn_model_forward.1} parent=0 // pred_region
    _
  $region21: #{cnn_model_forward.1} parent=0 // pred_fallthru
    _

</llo_original>
